<compile_context>
chip_gen: v7x
topology: tpu7x:2x2x1
jax: 0.10.0
libtpu: 0.0.40
codegen_flags: <defaults>
</compile_context>

<pallas_src>
import functools

import jax
import jax.numpy as jnp
from jax.experimental import pallas as pl
from jax.experimental.pallas import tpu as pltpu

_LANE = 128
_MIB = 1024 * 1024


def _roundup(x, m):
    return ((x + m - 1) // m) * m


def _wce_kernel(logits_ref, idx_ref, weights_ref, out_ref):
    # Block layout: classes on the sublane axis, anchors on the (128-)lane axis.
    # All blocks are lane-dense; the ragged tail block is clipped by Pallas and
    # every op below is lane-wise independent, so stale tail lanes are harmless.
    x = logits_ref[...].astype(jnp.float32)       # (C, TN) logits
    idx = idx_ref[...]                            # (1, TN) int32 target class
    w = weights_ref[...].astype(jnp.float32)      # (1, TN) anchor weights

    # Numerically stable log-sum-exp over classes (sublane reduction -> XLU,
    # exp/log -> EUP; all hidden under the input DMA).
    m = jnp.max(x, axis=0, keepdims=True)                               # (1, TN)
    lse = m + jnp.log(jnp.sum(jnp.exp(x - m), axis=0, keepdims=True))   # (1, TN)

    # Logit of the target class via iota-compare (exact torch argmax semantics,
    # including all-zero / soft target rows handled in the wrapper's argmax).
    cls = jax.lax.broadcasted_iota(jnp.int32, x.shape, 0)               # (C, TN)
    sel = jnp.sum(jnp.where(cls == idx, x, 0.0), axis=0, keepdims=True)  # (1, TN)

    out_ref[...] = ((lse - sel) * w).astype(out_ref.dtype)              # (1, TN)


def _step_vmem_bytes(tn, C, logits_itemsize):
    """VMEM bytes for one pipelined step (both buffers), incl. sublane padding."""
    sub = 32 // logits_itemsize                      # sublane granularity (8 f32, 16 bf16)
    logits_blk = _roundup(C, sub) * tn * logits_itemsize   # (C, tn) block
    row_blk = 32 * tn                                # each (1, tn) block pads to 8x4B rows
    return 2 * (logits_blk + 3 * row_blk)            # x2 pipeline buffers; idx + w + out


def _choose_tile(N, tile_n, C, logits_itemsize, vmem_budget_bytes):
    # Largest 128-multiple tile within the (corrected) VMEM budget.
    sub = 32 // logits_itemsize
    per_lane = 2 * (_roundup(C, sub) * logits_itemsize + 3 * 32)
    tn_cap = max(_LANE, (vmem_budget_bytes // per_lane // _LANE) * _LANE)
    tn = max(_LANE, min(_roundup(tile_n, _LANE), tn_cap))

    if N <= tn:
        if N > 2 * _LANE:
            # Split into >=2 blocks so both v7x TensorCores stream.
            tn = _roundup(pl.cdiv(N, 2), _LANE)
        else:
            tn = N   # single block; block dims == full array dims is always legal
    else:
        nblk = pl.cdiv(N, tn)
        nblk += nblk % 2             # even block count for 2-TC balance
        tn = _roundup(pl.cdiv(N, nblk), _LANE)
    return tn


def weighted_cross_entropy_loss(logits, target, weights, *, tile_n=65536,
                                vmem_budget_bytes=28 * _MIB):
    """logits/target: (B, A, C), weights: (B, A) -> loss (B, A) in logits.dtype."""
    B, A, C = logits.shape
    assert target.shape == (B, A, C) and weights.shape == (B, A)
    N = B * A

    # One-hot -> class index in the wrapper (single streaming pass, exact torch
    # argmax semantics); the kernel then only reads 4 bytes/anchor of target.
    idx = jnp.argmax(target, axis=-1).astype(jnp.int32).reshape(1, N)

    # Class-major lane-dense logits: anchors on the fast (lane) axis.
    # TODO(synk): have the producer emit (C, N) directly to kill this HBM copy.
    xt = jnp.transpose(logits.reshape(N, C))    # (C, N), materialized by XLA
    wt = weights.reshape(1, N)                  # free reshape

    itemsize = jnp.dtype(logits.dtype).itemsize
    tn = _choose_tile(N, tile_n, C, itemsize, vmem_budget_bytes)
    required = _step_vmem_bytes(tn, C, itemsize)
    vmem_limit = int(min(max(required + 4 * _MIB, 16 * _MIB), 48 * _MIB))

    grid = (pl.cdiv(N, tn),)

    loss = pl.pallas_call(
        _wce_kernel,
        out_shape=jax.ShapeDtypeStruct((1, N), logits.dtype),
        grid_spec=pltpu.PrefetchScalarGridSpec(
            num_scalar_prefetch=0,
            grid=grid,
            in_specs=[
                pl.BlockSpec((C, tn), lambda i: (0, i)),   # logits  (C, N)
                pl.BlockSpec((1, tn), lambda i: (0, i)),   # class idx (1, N) int32
                pl.BlockSpec((1, tn), lambda i: (0, i)),   # weights (1, N)
            ],
            out_specs=pl.BlockSpec((1, tn), lambda i: (0, i)),
        ),
        compiler_params=pltpu.CompilerParams(
            dimension_semantics=("parallel",),   # shard row tiles across v7x's 2 TCs
            vmem_limit_bytes=vmem_limit,
        ),
    )(xt, idx, wt)

    return loss.reshape(B, A)


def _reference(logits, target, weights):
    # pure-JAX reference matching
    # F.cross_entropy(input.permute(0,2,1), target.argmax(-1), 'none') * weights
    idx = jnp.argmax(target, axis=-1)
    logz = jax.nn.logsumexp(logits.astype(jnp.float32), axis=-1)
    sel = jnp.take_along_axis(logits.astype(jnp.float32), idx[..., None], axis=-1)[..., 0]
    return (logz - sel) * weights


if __name__ == "__main__":
    key = jax.random.PRNGKey(0)

    # Case 1: batch=2, anchors=16, classes=8 (single-block path).
    B, A, C = 2, 16, 8
    k1, k2, k3 = jax.random.split(key, 3)
    logits = jax.random.normal(k1, (B, A, C), dtype=jnp.float32)
    cls = jax.random.randint(k2, (B, A), 0, C)
    target = jax.nn.one_hot(cls, C, dtype=jnp.float32)
    weights = jax.random.uniform(k3, (B, A), dtype=jnp.float32)

    loss = weighted_cross_entropy_loss(logits, target, weights)
    jax.block_until_ready(loss)
    ref = _reference(logits, target, weights)
    assert loss.shape == (B, A)
    assert jnp.allclose(loss, ref, atol=1e-5, rtol=1e-5)

    # Case 2: pcdet-like C=3, multi-block grid with a ragged tail block, plus
    # all-zero "don't care" target rows (exercises exact argmax semantics).
    B2, A2, C2 = 3, 700, 3
    k4, k5, k6 = jax.random.split(jax.random.PRNGKey(0), 3)
    logits2 = jax.random.normal(k4, (B2, A2, C2), dtype=jnp.float32)
    cls2 = jax.random.randint(k5, (B2, A2), 0, C2)
    target2 = jax.nn.one_hot(cls2, C2, dtype=jnp.float32)
    target2 = target2.at[:, ::7, :].set(0.0)           # all-zero rows -> class 0
    weights2 = jax.random.uniform(k6, (B2, A2), dtype=jnp.float32)

    loss2 = weighted_cross_entropy_loss(logits2, target2, weights2, tile_n=512)
    jax.block_until_ready(loss2)
    ref2 = _reference(logits2, target2, weights2)
    assert loss2.shape == (B2, A2)
    assert jnp.allclose(loss2, ref2, atol=1e-5, rtol=1e-5)

    print("KERNEL_OK")
</pallas_src>

<mosaic_0001>
module attributes {stable_mosaic.version = 11 : i64} {
  func.func @_wce_kernel(%arg0: i32, %arg1: memref<8x32xf32, #tpu.memory_space<vmem>>, %arg2: memref<1x32xi32, #tpu.memory_space<vmem>>, %arg3: memref<1x32xf32, #tpu.memory_space<vmem>>, %arg4: memref<1x32xf32, #tpu.memory_space<vmem>>) attributes {dimension_semantics = [#tpu.dimension_semantics<parallel>], iteration_bounds = array<i64: 1>, scalar_prefetch = 0 : i64, scratch_operands = 0 : i64, tpu.core_type = #tpu.core_type<tc>, window_params = [{transform_indices = @transform_0, window_bounds = array<i64: 8, 32>}, {transform_indices = @transform_1, window_bounds = array<i64: 1, 32>}, {transform_indices = @transform_2, window_bounds = array<i64: 1, 32>}, {transform_indices = @transform_3, window_bounds = array<i64: 1, 32>}]} {
    %c0 = arith.constant 0 : index
    %c0_0 = arith.constant 0 : index
    %0 = vector.load %arg1[%c0, %c0_0] : memref<8x32xf32, #tpu.memory_space<vmem>>, vector<8x32xf32>
    %c0_1 = arith.constant 0 : index
    %c0_2 = arith.constant 0 : index
    %1 = vector.load %arg2[%c0_1, %c0_2] : memref<1x32xi32, #tpu.memory_space<vmem>>, vector<1x32xi32>
    %c0_3 = arith.constant 0 : index
    %c0_4 = arith.constant 0 : index
    %2 = vector.load %arg3[%c0_3, %c0_4] : memref<1x32xf32, #tpu.memory_space<vmem>>, vector<1x32xf32>
    %cst = arith.constant dense<0xFF800000> : vector<32xf32>
    %3 = vector.multi_reduction <maximumf>, %0, %cst [0] : vector<8x32xf32> to vector<32xf32>
    %4 = vector.shape_cast %3 : vector<32xf32> to vector<1x32xf32>
    %5 = vector.broadcast %4 : vector<1x32xf32> to vector<8x32xf32>
    %6 = arith.subf %0, %5 : vector<8x32xf32>
    %7 = math.exp %6 : vector<8x32xf32>
    %cst_5 = arith.constant dense<0.000000e+00> : vector<32xf32>
    %8 = vector.multi_reduction <add>, %7, %cst_5 [0] : vector<8x32xf32> to vector<32xf32>
    %9 = vector.shape_cast %8 : vector<32xf32> to vector<1x32xf32>
    %10 = math.log %9 : vector<1x32xf32>
    %11 = arith.addf %4, %10 : vector<1x32xf32>
    %12 = tpu.iota {dimensions = array<i32: 0>} : vector<8x32xi32>
    %13 = vector.broadcast %1 : vector<1x32xi32> to vector<8x32xi32>
    %14 = arith.cmpi eq, %12, %13 : vector<8x32xi32>
    %cst_6 = arith.constant 0.000000e+00 : f32
    %15 = vector.broadcast %cst_6 : f32 to vector<8x32xf32>
    %16 = arith.select %14, %0, %15 : vector<8x32xi1>, vector<8x32xf32>
    %cst_7 = arith.constant dense<0.000000e+00> : vector<32xf32>
    %17 = vector.multi_reduction <add>, %16, %cst_7 [0] : vector<8x32xf32> to vector<32xf32>
    %18 = vector.shape_cast %17 : vector<32xf32> to vector<1x32xf32>
    %19 = arith.subf %11, %18 : vector<1x32xf32>
    %20 = arith.mulf %19, %2 : vector<1x32xf32>
    %c0_8 = arith.constant 0 : index
    %c0_9 = arith.constant 0 : index
    %21 = vector.load %arg4[%c0_8, %c0_9] : memref<1x32xf32, #tpu.memory_space<vmem>>, vector<1x32xf32>
    tpu.vector_store %arg4[%c0_8, %c0_9], %20 {strides = array<i32>} : memref<1x32xf32, #tpu.memory_space<vmem>>, vector<1x32xf32>,
    return
  }
  func.func @transform_0(%arg0: i32) -> (i32, i32) {
    %c0_i32 = arith.constant 0 : i32
    %c0_i32_0 = arith.constant 0 : i32
    return %c0_i32, %arg0 : i32, i32
  }
  func.func @transform_1(%arg0: i32) -> (i32, i32) {
    %c0_i32 = arith.constant 0 : i32
    %c0_i32_0 = arith.constant 0 : i32
    return %c0_i32, %arg0 : i32, i32
  }
  func.func @transform_2(%arg0: i32) -> (i32, i32) {
    %c0_i32 = arith.constant 0 : i32
    %c0_i32_0 = arith.constant 0 : i32
    return %c0_i32, %arg0 : i32, i32
  }
  func.func @transform_3(%arg0: i32) -> (i32, i32) {
    %c0_i32 = arith.constant 0 : i32
    %c0_i32_0 = arith.constant 0 : i32
    return %c0_i32, %arg0 : i32, i32
  }
}

</mosaic_0001>

<llo_original>
// kernel: tpu_custom_call.1
$region0: #{tpu_custom_call.1}
  #allocation0 [shape = 'u32[]', space=smem, size = 0x4, offset = 0x4, fixed_abs, tag = 'smem constant byte address 0x4 - core index']
  #allocation1 [shape = 'u32[144,128]{1,0:T(1,128)}', space=vmem, size = 0x12000, scoped, tag = 'internal scratch']
  %s0 = inlined_call_operand.hbm [shape: f32[8,32], index: 0, kind: input, shape index: {}]
  %s1 = inlined_call_operand.vmem [shape: s32[1,32], index: 1, kind: input, shape index: {}]
  %s2 = inlined_call_operand.vmem [shape: f32[1,32], index: 2, kind: input, shape index: {}]
  %s3 = inlined_call_operand.hbm [shape: f32[1,32], index: 3, kind: output, shape index: {}]
  %s4 = sld [smem:[#allocation0]]
  $region26: #{tpu_custom_call.1} parent=0
    _
  %s6 = ssub.s32 1, %s4
  %s7 = scalar_select 0, %s6, %s4
  $region1: #{tpu_custom_call.1} parent=0
    #allocation2 [shape = 'u8[4096]{0}', space=vmem, size = 0x1000, scoped, tag = 'input window, operand 0, single buffered']
    #allocation3 [shape = 's32[1]{0}', space=sflag, size = 0x4, scoped, tag = 'scoped memory for tpu_custom_call.1']
    #allocation4 [shape = 's32[1]{0}', space=sflag, size = 0x4, scoped, tag = 'scoped memory for tpu_custom_call.1']
    #allocation5 [shape = 'u8[512]{0}', space=vmem, size = 0x400, scoped, tag = 'output window, operand 0, single buffered']
    %8 = vsyncpa [#allocation3], 0
    %9 = vsyncpa [#allocation4], 0
    // Predicated region
    $region2: #{tpu_custom_call.1} parent=1 // pred_check
      _
    $region3: #{tpu_custom_call.1} parent=1 // pred_check_branch
      %11 = sbr.rel (0) target = $region5
    $region4: #{tpu_custom_call.1} parent=1 // pred_region
      %s13 = ssub.s32 128, 128
      %14 = vsyncadd [#allocation3], %s13
      %s16 = sshll.u32 [#allocation2], 4
      %s17 = int_to_ptr.vmem [resolvable:$true] %s16
      %19 = dma.hbm_to_vmem [thread:$0]  %s0, 128, %s17, [#allocation3]
    $region5: #{tpu_custom_call.1} parent=1 // pred_fallthru
      _
    // Predicated region
    $region6: #{tpu_custom_call.1} parent=1 // pred_check
      _
    $region7: #{tpu_custom_call.1} parent=1 // pred_check_branch
      %21 = sbr.rel (0) target = $region9
    $region8: #{tpu_custom_call.1} parent=1 // pred_region
      _
    $region9: #{tpu_custom_call.1} parent=1 // pred_fallthru
      _
    // Predicated region
    $region10: #{tpu_custom_call.1} parent=1 // pred_check
      _
    $region11: #{tpu_custom_call.1} parent=1 // pred_check_branch
      %23 = sbr.rel (0) target = $region13
    $region12: #{tpu_custom_call.1} parent=1 // pred_region
      _
    $region13: #{tpu_custom_call.1} parent=1 // pred_fallthru
      _
    // Predicated region
    $region14: #{tpu_custom_call.1} parent=1 // pred_check
      _
    $region15: #{tpu_custom_call.1} parent=1 // pred_check_branch
      %25 = sbr.rel (0) target = $region17
    $region16: #{tpu_custom_call.1} parent=1 // pred_region
      %26 = dma.done [#allocation3], 128
    $region17: #{tpu_custom_call.1} parent=1 // pred_fallthru
      _
    %v27 = vld [vmem:[#allocation2] sm:$0xff]
    %v28 = vld [vmem:[%s1] sm:$0x1]
    %v29 = vld [vmem:[%s2] sm:$0x1]
    %vm30 = vcmask 261120
    %v31 = vsel %vm30, %v27, -inf
    %v32 = vrot.slane %v31, 4
    %v33 = vmax.f32 %v31, %v32
    %v34 = vrot.slane %v33, 2
    %v35 = vmax.f32 %v33, %v34
    %v36 = vrot.slane %v35, 1
    %v37 = vmax.f32 %v35, %v36
    %v38 = vsub.f32 %v27, %v37
    %v39 = vmul.f32 %v38, 1.442695
    %v40 = vpow.pop %v39
    %v41 = vsel %vm30, %v40, 0.0
    %v42 = vrot.slane %v41, 4
    %v43 = vadd.f32 %v41, %v42
    %v44 = vrot.slane %v43, 2
    %v45 = vadd.f32 %v43, %v44
    %v46 = vrot.slane %v45, 1
    %v47 = vadd.f32 %v45, %v46
    %v48 = vlog2.pop %v47
    %v49 = vmul.f32 %v48, 0.6931472
    %v50 = vadd.f32 %v37, %v49
    %v51 = vlaneseq
    %v52 = vshrl.u32 %v51, 7
    %v53 = vlaneseq
    %v54 = vshrl.u32 %v53, 7
    %v55 = vsub.s32 0, %v54
    %v56 = vrot.slane %v28, %v55
    %vm57 = vcmp.eq.s32.totalorder %v52, %v56
    %v58 = vsel %vm57, %v27, 0.0
    %v59 = vsel %vm30, %v58, 0.0
    %v60 = vrot.slane %v59, 4
    %v61 = vadd.f32 %v59, %v60
    %v62 = vrot.slane %v61, 2
    %v63 = vadd.f32 %v61, %v62
    %v64 = vrot.slane %v63, 1
    %v65 = vadd.f32 %v63, %v64
    %v66 = vsub.f32 %v50, %v65
    %v67 = vmul.f32 %v66, %v29
    %vm68 = vcmask 253952
    %69 = vst.msk [vmem:[#allocation5] sm:$0x1] %vm68, %v67
    // Predicated region
    $region18: #{tpu_custom_call.1} parent=1 // pred_check
      _
    $region19: #{tpu_custom_call.1} parent=1 // pred_check_branch
      %71 = sbr.rel (0) target = $region21
    $region20: #{tpu_custom_call.1} parent=1 // pred_region
      %s73 = ssub.s32 16, 16
      %74 = vsyncadd [#allocation4], %s73
      %s76 = sshll.u32 [#allocation5], 4
      %s77 = int_to_ptr.vmem [resolvable:$true] %s76
      %79 = dma.vmem_to_hbm [thread:$0]  %s77, 16, %s3, [#allocation4]
    $region21: #{tpu_custom_call.1} parent=1 // pred_fallthru
      _
    // Predicated region
    $region22: #{tpu_custom_call.1} parent=1 // pred_check
      _
    $region23: #{tpu_custom_call.1} parent=1 // pred_check_branch
      %81 = sbr.rel (0) target = $region25
    $region24: #{tpu_custom_call.1} parent=1 // pred_region
      %82 = dma.done [#allocation4], 16
    $region25: #{tpu_custom_call.1} parent=1 // pred_fallthru
      _
    %83 = vsyncpa [#allocation3], 1
    %84 = vsyncpa [#allocation4], 1

</llo_original>
